<compile_context>
chip_gen: v7x
topology: tpu7x:2x2x1
jax: 0.10.0
libtpu: 0.0.40
codegen_flags: <defaults>
</compile_context>

<pallas_src>
import numpy as np
import jax
import jax.numpy as jnp
from jax.experimental import pallas as pl
from jax.experimental.pallas import tpu as pltpu


def _round_up(x, m):
    return ((x + m - 1) // m) * m


# ----------------------------- Pallas kernel --------------------------------

def set_criterion_kernel(nbox_ref,                                   # scalar prefetch (SMEM), (1,) int32
                         logits_ref, tgt_ref, weight_ref, boxes_ref,  # VMEM inputs
                         out_ref,                                     # VMEM output (1, 128)
                         num_acc, den_acc):                           # VMEM scratch (1, TQ) each
    i = pl.program_id(0)

    @pl.when(i == 0)
    def _init():
        num_acc[...] = jnp.zeros_like(num_acc)
        den_acc[...] = jnp.zeros_like(den_acc)

    # ---- weighted cross-entropy (lane-dense: classes on sublanes, queries on lanes)
    logits = logits_ref[...].astype(jnp.float32)          # (C1, TQ)  (bf16 inputs also fine)
    tgt = tgt_ref[...]                                    # (1,  TQ) int32, -1 => padded query
    c1, tq = logits.shape

    cls_iota = jax.lax.broadcasted_iota(jnp.int32, (c1, tq), 0)
    sel = cls_iota == tgt                                 # (C1, TQ) bool (no materialized onehot)

    m = jnp.max(logits, axis=0, keepdims=True)                                # (1, TQ)  sublane reduce
    lse = jnp.log(jnp.sum(jnp.exp(logits - m), axis=0, keepdims=True)) + m    # (1, TQ)  EUP exp/log
    picked = jnp.sum(jnp.where(sel, logits, 0.0), axis=0, keepdims=True)      # (1, TQ)
    nll = lse - picked                                                        # (1, TQ)

    w = weight_ref[...].astype(jnp.float32)                                   # (C1, 1)
    w_per = jnp.sum(jnp.where(sel, w, 0.0), axis=0, keepdims=True)            # (1, TQ); 0 for pads

    num_acc[...] += w_per * nll
    den_acc[...] += w_per

    # ---- finalize: CE reduce + segment losses, single lane-dense store
    @pl.when(i == pl.num_programs(0) - 1)
    def _finalize():
        inv_nb = 1.0 / nbox_ref[0].astype(jnp.float32)    # computed once, reused for both losses

        boxes = boxes_ref[...]                            # (8, NP) f32, lane-dense over matches
        s0 = boxes[0:1, :]
        s1 = boxes[1:2, :]
        t0 = boxes[2:3, :]
        t1 = boxes[3:4, :]
        mask = boxes[4:5, :]                              # 1.0 valid, 0.0 padded

        l1_sum = jnp.sum(mask * (jnp.abs(s0 - t0) + jnp.abs(s1 - t1)))

        inter = jnp.maximum(jnp.minimum(s1, t1) - jnp.maximum(s0, t0), 0.0)
        union = (s1 - s0) + (t1 - t0) - inter
        safe_union = jnp.where(union != 0.0, union, 1.0)  # guard degenerate segments
        iou = inter / safe_union
        iou_sum = jnp.sum(mask * (1.0 - iou))

        ce = jnp.sum(num_acc[...]) / jnp.sum(den_acc[...])
        loss_l1 = l1_sum * inv_nb
        loss_iou = iou_sum * inv_nb

        lane = jax.lax.broadcasted_iota(jnp.int32, (1, 128), 1)
        out_ref[...] = (jnp.where(lane == 0, ce, 0.0)
                        + jnp.where(lane == 1, loss_l1, 0.0)
                        + jnp.where(lane == 2, loss_iou, 0.0))


def run_set_criterion_kernel(logits_t, tgt_row, weight_col, boxes_packed, nbox_i32,
                             *, tile_q=1024):
    c1, bq_pad = logits_t.shape
    nrows, npad = boxes_packed.shape
    tq = min(tile_q, bq_pad)
    assert tq % 128 == 0 and bq_pad % tq == 0
    n_tiles = bq_pad // tq

    out = pl.pallas_call(
        set_criterion_kernel,
        out_shape=jax.ShapeDtypeStruct((1, 128), jnp.float32),
        grid_spec=pltpu.PrefetchScalarGridSpec(
            num_scalar_prefetch=1,
            grid=(n_tiles,),
            in_specs=[
                pl.BlockSpec((c1, tq), lambda i, nb: (0, i)),       # logits (C1, TQ) tile
                pl.BlockSpec((1, tq), lambda i, nb: (0, i)),        # targets (1, TQ) tile
                pl.BlockSpec((c1, 1), lambda i, nb: (0, 0)),        # class weights, resident
                pl.BlockSpec((nrows, npad), lambda i, nb: (0, 0)),  # packed boxes, resident
            ],
            out_specs=pl.BlockSpec((1, 128), lambda i, nb: (0, 0)),
            scratch_shapes=[pltpu.VMEM((1, tq), jnp.float32),       # num accumulator
                            pltpu.VMEM((1, tq), jnp.float32)],      # den accumulator
        ),
        compiler_params=pltpu.CompilerParams(
            dimension_semantics=("arbitrary",),
            vmem_limit_bytes=64 << 20),
    )(nbox_i32, logits_t, tgt_row, weight_col, boxes_packed)
    return out


# ------------------------------ host-side glue -------------------------------

def compute_cost_matrices(pred_logits, pred_boundaries, targets):
    """Cost matrices computed on device (XLA); only the small (Q, n) arrays go to host."""
    probs = jax.nn.softmax(jnp.asarray(pred_logits, jnp.float32), axis=-1)   # (B, Q, C1)
    boxes = jnp.asarray(pred_boundaries, jnp.float32)                        # (B, Q, 2)
    costs = []
    for b, t in enumerate(targets):
        cls = jnp.asarray(np.asarray(t['classes'], np.int32))
        coords = jnp.asarray(np.asarray(t['coordinates'], np.float32))
        cost_class = -probs[b][:, cls]                                            # (Q, n)
        cost_l1 = jnp.abs(boxes[b][:, None, :] - coords[None, :, :]).sum(-1)      # (Q, n)
        costs.append(np.asarray(cost_class + cost_l1))
    return costs


def simple_greedy_matcher(pred_logits, pred_boundaries, targets):
    """Greedy cost-based matcher (stands in for the Hungarian matcher module)."""
    # TODO(synk): greedy assignment is a semantic divergence from the Hungarian matcher.
    costs = compute_cost_matrices(pred_logits, pred_boundaries, targets)
    indices = []
    for cost, t in zip(costs, targets):
        n = len(np.asarray(t['classes']))
        used = set()
        src, tgt = [], []
        for j in range(n):
            for q in np.argsort(cost[:, j]):
                if int(q) not in used:
                    used.add(int(q))
                    src.append(int(q))
                    tgt.append(j)
                    break
        indices.append((np.asarray(src, np.int64), np.asarray(tgt, np.int64)))
    return indices


def set_criterion_forward(outputs, targets, num_classes, eos_coef, *, tile_q=1024):
    pred_logits = np.asarray(outputs['pred_logits'], np.float32)          # (B, Q, C+1)
    pred_boundaries = np.asarray(outputs['pred_boundaries'], np.float32)  # (B, Q, 2)
    B, Q, C1 = pred_logits.shape
    assert C1 == num_classes + 1

    indices = simple_greedy_matcher(outputs['pred_logits'], outputs['pred_boundaries'], targets)

    # _get_src_permutation_idx
    batch_idx = np.concatenate([np.full_like(src, i) for i, (src, _) in enumerate(indices)])
    src_idx = np.concatenate([src for src, _ in indices])
    n_match = int(len(src_idx))

    # target classes scattered into [B, Q], filled with "no-object"
    target_classes = np.full((B, Q), num_classes, dtype=np.int32)
    if n_match:
        target_classes_o = np.concatenate(
            [np.asarray(t['classes'])[J] for t, (_, J) in zip(targets, indices)])
        target_classes[batch_idx, src_idx] = target_classes_o

    # matched boxes
    if n_match:
        src_boxes = pred_boundaries[batch_idx, src_idx]                   # (N, 2)
        target_boxes = np.concatenate(
            [np.asarray(t['coordinates'])[J] for t, (_, J) in zip(targets, indices)], axis=0)
    else:
        src_boxes = np.zeros((0, 2), np.float32)
        target_boxes = np.zeros((0, 2), np.float32)

    num_boxes = int(max(sum(len(t['classes']) for t in targets), 1))

    # ---- lane-dense packing for the kernel ----
    bq = B * Q
    bq_128 = _round_up(bq, 128)
    tq = bq_128 if bq_128 <= tile_q else tile_q
    bq_pad = _round_up(bq, tq)

    logits_t = np.zeros((C1, bq_pad), np.float32)
    logits_t[:, :bq] = pred_logits.reshape(bq, C1).T        # classes on sublanes, queries on lanes
    tgt_row = np.full((1, bq_pad), -1, np.int32)             # -1 => padded query (zero weight)
    tgt_row[0, :bq] = target_classes.reshape(bq)

    weight_col = np.ones((C1, 1), np.float32)
    weight_col[-1, 0] = eos_coef

    n_pad = max(128, _round_up(n_match, 128))
    boxes_packed = np.zeros((8, n_pad), np.float32)
    if n_match:
        boxes_packed[0, :n_match] = src_boxes[:, 0]
        boxes_packed[1, :n_match] = src_boxes[:, 1]
        boxes_packed[2, :n_match] = target_boxes[:, 0]
        boxes_packed[3, :n_match] = target_boxes[:, 1]
        boxes_packed[4, :n_match] = 1.0

    out = run_set_criterion_kernel(
        jnp.asarray(logits_t), jnp.asarray(tgt_row), jnp.asarray(weight_col),
        jnp.asarray(boxes_packed), jnp.asarray([num_boxes], jnp.int32), tile_q=tq)

    losses = {'loss_ce': out[0, 0], 'loss_ssegments': out[0, 1], 'loss_IOU': out[0, 2]}
    ref_args = (pred_logits.reshape(bq, C1), target_classes.reshape(bq),
                weight_col[:, 0], src_boxes, target_boxes, float(num_boxes))
    return losses, ref_args


def reference_losses(logits2d, tgt, w, srcb, tgtb, num_boxes):
    """Pure-numpy reference replicating the PyTorch semantics."""
    logits = np.asarray(logits2d, np.float64)
    tgt = np.asarray(tgt)
    w = np.asarray(w, np.float64)
    m = logits.max(-1, keepdims=True)
    lse = np.log(np.exp(logits - m).sum(-1, keepdims=True)) + m
    nll = lse[:, 0] - logits[np.arange(logits.shape[0]), tgt]
    w_per = w[tgt]
    loss_ce = (w_per * nll).sum() / w_per.sum()

    src = np.asarray(srcb, np.float64)
    tg = np.asarray(tgtb, np.float64)
    loss_l1 = np.abs(src - tg).sum() / num_boxes
    inter = np.clip(np.minimum(src[:, 1], tg[:, 1]) - np.maximum(src[:, 0], tg[:, 0]), 0, None)
    union = (src[:, 1] - src[:, 0]) + (tg[:, 1] - tg[:, 0]) - inter
    loss_iou = (1.0 - inter / union).sum() / num_boxes
    return loss_ce, loss_l1, loss_iou


# ---------------------------------- main -------------------------------------

if __name__ == "__main__":
    key = jax.random.PRNGKey(0)
    B, Q, num_classes = 2, 8, 4
    C1 = num_classes + 1
    eos_coef = 0.1
    n_tgt_per_batch = 3

    k1, k2, k3, k4, _ = jax.random.split(key, 5)

    pred_logits = jax.random.normal(k1, (B, Q, C1), jnp.float32)
    # predicted boundaries: (start, end) with end > start, in (0, 1)
    starts = jax.random.uniform(k2, (B, Q, 1), minval=0.0, maxval=0.5)
    lens = jax.random.uniform(k3, (B, Q, 1), minval=0.1, maxval=0.4)
    pred_boundaries = jnp.concatenate([starts, starts + lens], axis=-1)

    targets = []
    tk = k4
    for b in range(B):
        tk, ka, kb, kc = jax.random.split(tk, 4)
        cls = np.asarray(jax.random.randint(ka, (n_tgt_per_batch,), 0, num_classes))
        ts = np.asarray(jax.random.uniform(kb, (n_tgt_per_batch, 1), minval=0.0, maxval=0.5))
        tl = np.asarray(jax.random.uniform(kc, (n_tgt_per_batch, 1), minval=0.1, maxval=0.4))
        coords = np.concatenate([ts, ts + tl], axis=-1)
        targets.append({'classes': cls.astype(np.int64),
                        'coordinates': coords.astype(np.float32)})

    outputs = {'pred_logits': pred_logits, 'pred_boundaries': pred_boundaries}

    losses, ref_args = set_criterion_forward(outputs, targets, num_classes, eos_coef)
    losses = {k: jax.block_until_ready(v) for k, v in losses.items()}

    ref_ce, ref_l1, ref_iou = reference_losses(*ref_args)
    np.testing.assert_allclose(float(losses['loss_ce']), ref_ce, rtol=1e-5, atol=1e-5)
    np.testing.assert_allclose(float(losses['loss_ssegments']), ref_l1, rtol=1e-5, atol=1e-5)
    np.testing.assert_allclose(float(losses['loss_IOU']), ref_iou, rtol=1e-5, atol=1e-5)

    print("KERNEL_OK")
</pallas_src>

<mosaic_0001>
module attributes {stable_mosaic.version = 11 : i64} {
  func.func @set_criterion_kernel(%arg0: i32, %arg1: memref<1xi32, #tpu.memory_space<smem>>, %arg2: memref<5x128xf32, #tpu.memory_space<vmem>>, %arg3: memref<1x128xi32, #tpu.memory_space<vmem>>, %arg4: memref<5x1xf32, #tpu.memory_space<vmem>>, %arg5: memref<8x128xf32, #tpu.memory_space<vmem>>, %arg6: memref<1x128xf32, #tpu.memory_space<vmem>>, %arg7: memref<1x128xf32, #tpu.memory_space<vmem>>, %arg8: memref<1x128xf32, #tpu.memory_space<vmem>>) attributes {dimension_semantics = [#tpu.dimension_semantics<arbitrary>], iteration_bounds = array<i64: 1>, scalar_prefetch = 1 : i64, scratch_operands = 2 : i64, tpu.core_type = #tpu.core_type<tc>, window_params = [{transform_indices = @transform_0, window_bounds = array<i64: 5, 128>}, {transform_indices = @transform_1, window_bounds = array<i64: 1, 128>}, {pipeline_mode = #tpu.pipeline_mode<synchronous>, transform_indices = @transform_2, window_bounds = array<i64: 5, 1>}, {pipeline_mode = #tpu.pipeline_mode<synchronous>, transform_indices = @transform_3, window_bounds = array<i64: 8, 128>}, {pipeline_mode = #tpu.pipeline_mode<synchronous>, transform_indices = @transform_4, window_bounds = array<i64: 1, 128>}]} {
    %c0_i32 = arith.constant 0 : i32
    %0 = arith.cmpi eq, %arg0, %c0_i32 : i32
    %1 = arith.extui %0 : i1 to i32
    %c0_i32_0 = arith.constant 0 : i32
    %2 = arith.cmpi ne, %1, %c0_i32_0 : i32
    scf.if %2 {
      %cst_21 = arith.constant 0.000000e+00 : f32
      %39 = vector.broadcast %cst_21 : f32 to vector<1x128xf32>
      %c0_22 = arith.constant 0 : index
      %c0_23 = arith.constant 0 : index
      %40 = vector.load %arg7[%c0_22, %c0_23] : memref<1x128xf32, #tpu.memory_space<vmem>>, vector<1x128xf32>
      tpu.vector_store %arg7[%c0_22, %c0_23], %39 {strides = array<i32>} : memref<1x128xf32, #tpu.memory_space<vmem>>, vector<1x128xf32>,
      %cst_24 = arith.constant 0.000000e+00 : f32
      %41 = vector.broadcast %cst_24 : f32 to vector<1x128xf32>
      %c0_25 = arith.constant 0 : index
      %c0_26 = arith.constant 0 : index
      %42 = vector.load %arg8[%c0_25, %c0_26] : memref<1x128xf32, #tpu.memory_space<vmem>>, vector<1x128xf32>
      tpu.vector_store %arg8[%c0_25, %c0_26], %41 {strides = array<i32>} : memref<1x128xf32, #tpu.memory_space<vmem>>, vector<1x128xf32>,
    } else {
    }
    %c0 = arith.constant 0 : index
    %c0_1 = arith.constant 0 : index
    %3 = vector.load %arg2[%c0, %c0_1] : memref<5x128xf32, #tpu.memory_space<vmem>>, vector<5x128xf32>
    %c0_2 = arith.constant 0 : index
    %c0_3 = arith.constant 0 : index
    %4 = vector.load %arg3[%c0_2, %c0_3] : memref<1x128xi32, #tpu.memory_space<vmem>>, vector<1x128xi32>
    %5 = tpu.iota {dimensions = array<i32: 0>} : vector<5x128xi32>
    %6 = vector.broadcast %4 : vector<1x128xi32> to vector<5x128xi32>
    %7 = arith.cmpi eq, %5, %6 : vector<5x128xi32>
    %cst = arith.constant dense<0xFF800000> : vector<128xf32>
    %8 = vector.multi_reduction <maximumf>, %3, %cst [0] : vector<5x128xf32> to vector<128xf32>
    %9 = vector.shape_cast %8 : vector<128xf32> to vector<1x128xf32>
    %10 = vector.broadcast %9 : vector<1x128xf32> to vector<5x128xf32>
    %11 = arith.subf %3, %10 : vector<5x128xf32>
    %12 = math.exp %11 : vector<5x128xf32>
    %cst_4 = arith.constant dense<0.000000e+00> : vector<128xf32>
    %13 = vector.multi_reduction <add>, %12, %cst_4 [0] : vector<5x128xf32> to vector<128xf32>
    %14 = vector.shape_cast %13 : vector<128xf32> to vector<1x128xf32>
    %15 = math.log %14 : vector<1x128xf32>
    %16 = arith.addf %15, %9 : vector<1x128xf32>
    %cst_5 = arith.constant 0.000000e+00 : f32
    %17 = vector.broadcast %cst_5 : f32 to vector<5x128xf32>
    %18 = arith.select %7, %3, %17 : vector<5x128xi1>, vector<5x128xf32>
    %cst_6 = arith.constant dense<0.000000e+00> : vector<128xf32>
    %19 = vector.multi_reduction <add>, %18, %cst_6 [0] : vector<5x128xf32> to vector<128xf32>
    %20 = vector.shape_cast %19 : vector<128xf32> to vector<1x128xf32>
    %21 = arith.subf %16, %20 : vector<1x128xf32>
    %c0_7 = arith.constant 0 : index
    %c0_8 = arith.constant 0 : index
    %22 = vector.load %arg4[%c0_7, %c0_8] : memref<5x1xf32, #tpu.memory_space<vmem>>, vector<5x1xf32>
    %cst_9 = arith.constant 0.000000e+00 : f32
    %23 = vector.shape_cast %22 : vector<5x1xf32> to vector<5x1xf32>
    %24 = vector.broadcast %23 : vector<5x1xf32> to vector<5x128xf32>
    %25 = vector.broadcast %cst_9 : f32 to vector<5x128xf32>
    %26 = arith.select %7, %24, %25 : vector<5x128xi1>, vector<5x128xf32>
    %cst_10 = arith.constant dense<0.000000e+00> : vector<128xf32>
    %27 = vector.multi_reduction <add>, %26, %cst_10 [0] : vector<5x128xf32> to vector<128xf32>
    %28 = vector.shape_cast %27 : vector<128xf32> to vector<1x128xf32>
    %c0_11 = arith.constant 0 : index
    %c0_12 = arith.constant 0 : index
    %29 = vector.load %arg7[%c0_11, %c0_12] : memref<1x128xf32, #tpu.memory_space<vmem>>, vector<1x128xf32>
    %30 = arith.mulf %28, %21 : vector<1x128xf32>
    %31 = arith.addf %29, %30 : vector<1x128xf32>
    %c0_13 = arith.constant 0 : index
    %c0_14 = arith.constant 0 : index
    %32 = vector.load %arg7[%c0_13, %c0_14] : memref<1x128xf32, #tpu.memory_space<vmem>>, vector<1x128xf32>
    tpu.vector_store %arg7[%c0_13, %c0_14], %31 {strides = array<i32>} : memref<1x128xf32, #tpu.memory_space<vmem>>, vector<1x128xf32>,
    %c0_15 = arith.constant 0 : index
    %c0_16 = arith.constant 0 : index
    %33 = vector.load %arg8[%c0_15, %c0_16] : memref<1x128xf32, #tpu.memory_space<vmem>>, vector<1x128xf32>
    %34 = arith.addf %33, %28 : vector<1x128xf32>
    %c0_17 = arith.constant 0 : index
    %c0_18 = arith.constant 0 : index
    %35 = vector.load %arg8[%c0_17, %c0_18] : memref<1x128xf32, #tpu.memory_space<vmem>>, vector<1x128xf32>
    tpu.vector_store %arg8[%c0_17, %c0_18], %34 {strides = array<i32>} : memref<1x128xf32, #tpu.memory_space<vmem>>, vector<1x128xf32>,
    %c0_i32_19 = arith.constant 0 : i32
    %36 = arith.cmpi eq, %arg0, %c0_i32_19 : i32
    %37 = arith.extui %36 : i1 to i32
    %c0_i32_20 = arith.constant 0 : i32
    %38 = arith.cmpi ne, %37, %c0_i32_20 : i32
    scf.if %38 {
      %c0_21 = arith.constant 0 : index
      %39 = memref.load %arg1[%c0_21] : memref<1xi32, #tpu.memory_space<smem>>
      %40 = arith.sitofp %39 : i32 to f32
      %cst_22 = arith.constant 1.000000e+00 : f32
      %41 = arith.divf %cst_22, %40 : f32
      %c0_23 = arith.constant 0 : index
      %c0_24 = arith.constant 0 : index
      %42 = vector.load %arg5[%c0_23, %c0_24] : memref<8x128xf32, #tpu.memory_space<vmem>>, vector<8x128xf32>
      %43 = vector.extract_strided_slice %42 {offsets = [0, 0], sizes = [1, 128], strides = [1, 1]} : vector<8x128xf32> to vector<1x128xf32>
      %44 = vector.extract_strided_slice %42 {offsets = [1, 0], sizes = [1, 128], strides = [1, 1]} : vector<8x128xf32> to vector<1x128xf32>
      %45 = vector.extract_strided_slice %42 {offsets = [2, 0], sizes = [1, 128], strides = [1, 1]} : vector<8x128xf32> to vector<1x128xf32>
      %46 = vector.extract_strided_slice %42 {offsets = [3, 0], sizes = [1, 128], strides = [1, 1]} : vector<8x128xf32> to vector<1x128xf32>
      %47 = vector.extract_strided_slice %42 {offsets = [4, 0], sizes = [1, 128], strides = [1, 1]} : vector<8x128xf32> to vector<1x128xf32>
      %48 = arith.subf %43, %45 : vector<1x128xf32>
      %49 = math.absf %48 : vector<1x128xf32>
      %50 = arith.subf %44, %46 : vector<1x128xf32>
      %51 = math.absf %50 : vector<1x128xf32>
      %52 = arith.addf %49, %51 : vector<1x128xf32>
      %53 = arith.mulf %47, %52 : vector<1x128xf32>
      %54 = vector.shape_cast %53 : vector<1x128xf32> to vector<1x1x128xf32>
      %cst_25 = arith.constant dense<0.000000e+00> : vector<1xf32>
      %55 = vector.multi_reduction <add>, %54, %cst_25 [1, 2] : vector<1x1x128xf32> to vector<1xf32>
      %56 = vector.shape_cast %55 : vector<1xf32> to vector<1x1x1xf32>
      %57 = vector.extract %56[0, 0, 0] : f32 from vector<1x1x1xf32>
      %58 = arith.minimumf %44, %46 : vector<1x128xf32>
      %59 = arith.maximumf %43, %45 : vector<1x128xf32>
      %60 = arith.subf %58, %59 : vector<1x128xf32>
      %cst_26 = arith.constant 0.000000e+00 : f32
      %61 = vector.broadcast %cst_26 : f32 to vector<1x128xf32>
      %62 = arith.maximumf %60, %61 : vector<1x128xf32>
      %63 = arith.subf %44, %43 : vector<1x128xf32>
      %64 = arith.subf %46, %45 : vector<1x128xf32>
      %65 = arith.addf %63, %64 : vector<1x128xf32>
      %66 = arith.subf %65, %62 : vector<1x128xf32>
      %cst_27 = arith.constant 0.000000e+00 : f32
      %67 = vector.broadcast %cst_27 : f32 to vector<1x128xf32>
      %68 = arith.cmpf one, %66, %67 : vector<1x128xf32>
      %cst_28 = arith.constant 1.000000e+00 : f32
      %69 = vector.broadcast %cst_28 : f32 to vector<1x128xf32>
      %70 = arith.select %68, %66, %69 : vector<1x128xi1>, vector<1x128xf32>
      %71 = arith.divf %62, %70 : vector<1x128xf32>
      %cst_29 = arith.constant 1.000000e+00 : f32
      %72 = vector.broadcast %cst_29 : f32 to vector<1x128xf32>
      %73 = arith.subf %72, %71 : vector<1x128xf32>
      %74 = arith.mulf %47, %73 : vector<1x128xf32>
      %75 = vector.shape_cast %74 : vector<1x128xf32> to vector<1x1x128xf32>
      %cst_30 = arith.constant dense<0.000000e+00> : vector<1xf32>
      %76 = vector.multi_reduction <add>, %75, %cst_30 [1, 2] : vector<1x1x128xf32> to vector<1xf32>
      %77 = vector.shape_cast %76 : vector<1xf32> to vector<1x1x1xf32>
      %78 = vector.extract %77[0, 0, 0] : f32 from vector<1x1x1xf32>
      %c0_31 = arith.constant 0 : index
      %c0_32 = arith.constant 0 : index
      %79 = vector.load %arg7[%c0_31, %c0_32] : memref<1x128xf32, #tpu.memory_space<vmem>>, vector<1x128xf32>
      %80 = vector.shape_cast %79 : vector<1x128xf32> to vector<1x1x128xf32>
      %cst_33 = arith.constant dense<0.000000e+00> : vector<1xf32>
      %81 = vector.multi_reduction <add>, %80, %cst_33 [1, 2] : vector<1x1x128xf32> to vector<1xf32>
      %82 = vector.shape_cast %81 : vector<1xf32> to vector<1x1x1xf32>
      %83 = vector.extract %82[0, 0, 0] : f32 from vector<1x1x1xf32>
      %c0_34 = arith.constant 0 : index
      %c0_35 = arith.constant 0 : index
      %84 = vector.load %arg8[%c0_34, %c0_35] : memref<1x128xf32, #tpu.memory_space<vmem>>, vector<1x128xf32>
      %85 = vector.shape_cast %84 : vector<1x128xf32> to vector<1x1x128xf32>
      %cst_36 = arith.constant dense<0.000000e+00> : vector<1xf32>
      %86 = vector.multi_reduction <add>, %85, %cst_36 [1, 2] : vector<1x1x128xf32> to vector<1xf32>
      %87 = vector.shape_cast %86 : vector<1xf32> to vector<1x1x1xf32>
      %88 = vector.extract %87[0, 0, 0] : f32 from vector<1x1x1xf32>
      %89 = arith.divf %83, %88 : f32
      %90 = arith.mulf %57, %41 : f32
      %91 = arith.mulf %78, %41 : f32
      %92 = tpu.iota {dimensions = array<i32: 1>} : vector<1x128xi32>
      %c0_i32_37 = arith.constant 0 : i32
      %93 = vector.broadcast %c0_i32_37 : i32 to vector<1x128xi32>
      %94 = arith.cmpi eq, %92, %93 : vector<1x128xi32>
      %cst_38 = arith.constant 0.000000e+00 : f32
      %95 = vector.broadcast %89 : f32 to vector<1x128xf32>
      %96 = vector.broadcast %cst_38 : f32 to vector<1x128xf32>
      %97 = arith.select %94, %95, %96 : vector<1x128xi1>, vector<1x128xf32>
      %c1_i32 = arith.constant 1 : i32
      %98 = vector.broadcast %c1_i32 : i32 to vector<1x128xi32>
      %99 = arith.cmpi eq, %92, %98 : vector<1x128xi32>
      %cst_39 = arith.constant 0.000000e+00 : f32
      %100 = vector.broadcast %90 : f32 to vector<1x128xf32>
      %101 = vector.broadcast %cst_39 : f32 to vector<1x128xf32>
      %102 = arith.select %99, %100, %101 : vector<1x128xi1>, vector<1x128xf32>
      %103 = arith.addf %97, %102 : vector<1x128xf32>
      %c2_i32 = arith.constant 2 : i32
      %104 = vector.broadcast %c2_i32 : i32 to vector<1x128xi32>
      %105 = arith.cmpi eq, %92, %104 : vector<1x128xi32>
      %cst_40 = arith.constant 0.000000e+00 : f32
      %106 = vector.broadcast %91 : f32 to vector<1x128xf32>
      %107 = vector.broadcast %cst_40 : f32 to vector<1x128xf32>
      %108 = arith.select %105, %106, %107 : vector<1x128xi1>, vector<1x128xf32>
      %109 = arith.addf %103, %108 : vector<1x128xf32>
      %c0_41 = arith.constant 0 : index
      %c0_42 = arith.constant 0 : index
      %110 = vector.load %arg6[%c0_41, %c0_42] : memref<1x128xf32, #tpu.memory_space<vmem>>, vector<1x128xf32>
      tpu.vector_store %arg6[%c0_41, %c0_42], %109 {strides = array<i32>} : memref<1x128xf32, #tpu.memory_space<vmem>>, vector<1x128xf32>,
    } else {
    }
    return
  }
  func.func @transform_0(%arg0: i32, %arg1: memref<1xi32, #tpu.memory_space<smem>>) -> (i32, i32) {
    %c0_i32 = arith.constant 0 : i32
    %c0_i32_0 = arith.constant 0 : i32
    return %c0_i32, %arg0 : i32, i32
  }
  func.func @transform_1(%arg0: i32, %arg1: memref<1xi32, #tpu.memory_space<smem>>) -> (i32, i32) {
    %c0_i32 = arith.constant 0 : i32
    %c0_i32_0 = arith.constant 0 : i32
    return %c0_i32, %arg0 : i32, i32
  }
  func.func @transform_2(%arg0: i32, %arg1: memref<1xi32, #tpu.memory_space<smem>>) -> (i32, i32) {
    %c0_i32 = arith.constant 0 : i32
    %c0_i32_0 = arith.constant 0 : i32
    %c0_i32_1 = arith.constant 0 : i32
    return %c0_i32, %c0_i32_0 : i32, i32
  }
  func.func @transform_3(%arg0: i32, %arg1: memref<1xi32, #tpu.memory_space<smem>>) -> (i32, i32) {
    %c0_i32 = arith.constant 0 : i32
    %c0_i32_0 = arith.constant 0 : i32
    %c0_i32_1 = arith.constant 0 : i32
    return %c0_i32, %c0_i32_0 : i32, i32
  }
  func.func @transform_4(%arg0: i32, %arg1: memref<1xi32, #tpu.memory_space<smem>>) -> (i32, i32) {
    %c0_i32 = arith.constant 0 : i32
    %c0_i32_0 = arith.constant 0 : i32
    %c0_i32_1 = arith.constant 0 : i32
    return %c0_i32, %c0_i32_0 : i32, i32
  }
}

</mosaic_0001>

<llo_original>
// kernel: tpu_custom_call.1
$region0: #{tpu_custom_call.1}
  #allocation0 [shape = 'u32[]', space=smem, size = 0x4, offset = 0x4, fixed_abs, tag = 'smem constant byte address 0x4 - core index']
  #allocation1 [shape = 'u32[144,128]{1,0:T(1,128)}', space=vmem, size = 0x12000, scoped, tag = 'internal scratch']
  #allocation2 [shape = 'f32[1,128]{1,0:T(1,128)}', space=vmem, size = 0x200, scoped, tag = 'scratch operand']
  #allocation3 [shape = 'f32[1,128]{1,0:T(1,128)}', space=vmem, size = 0x200, scoped, tag = 'scratch operand']
  #allocation4 [shape = 's32[1]{0}', space=sflag, size = 0x4, scoped, tag = 'scoped memory for tpu_custom_call.1']
  #allocation5 [shape = 's32[1]{0:T(128)S(6)}', space=smem, size = 0x200, scoped, tag = 'prefetched SMEM operand 0']
  %s0 = inlined_call_operand.<no memory space> [shape: s32[1], index: 0, kind: input, shape index: {}]
  %s1 = inlined_call_operand.hbm [shape: f32[5,128], index: 1, kind: input, shape index: {}]
  %s2 = inlined_call_operand.hbm [shape: s32[1,128], index: 2, kind: input, shape index: {}]
  %s3 = inlined_call_operand.hbm [shape: f32[5,1], index: 3, kind: input, shape index: {}]
  %s4 = inlined_call_operand.hbm [shape: f32[8,128], index: 4, kind: input, shape index: {}]
  %s5 = inlined_call_operand.hbm [shape: f32[1,128], index: 5, kind: output, shape index: {}]
  %s6 = sld [smem:[#allocation0]]
  $region50: #{tpu_custom_call.1} parent=0
    _
  %s8 = ssub.s32 1, %s6
  %s9 = scalar_select 0, %s8, %s6
  %10 = sst [smem:[#allocation5]] %s0
  $region1: #{tpu_custom_call.1} parent=0
    #allocation6 [shape = 'u8[4096]{0}', space=vmem, size = 0x1000, scoped, tag = 'input window, operand 1, single buffered']
    #allocation7 [shape = 's32[1]{0}', space=sflag, size = 0x4, scoped, tag = 'scoped memory for tpu_custom_call.1']
    #allocation8 [shape = 's32[1]{0}', space=sflag, size = 0x4, scoped, tag = 'scoped memory for tpu_custom_call.1']
    #allocation9 [shape = 'u8[512]{0}', space=vmem, size = 0x400, scoped, tag = 'input window, operand 2, single buffered']
    #allocation10 [shape = 's32[1]{0}', space=sflag, size = 0x4, scoped, tag = 'scoped memory for tpu_custom_call.1']
    #allocation11 [shape = 'u8[4096]{0}', space=vmem, size = 0x1000, scoped, tag = 'input window, operand 3, single buffered']
    #allocation12 [shape = 'u8[4096]{0}', space=vmem, size = 0x1000, scoped, tag = 'input window, operand 4, single buffered']
    #allocation13 [shape = 's32[1]{0}', space=sflag, size = 0x4, scoped, tag = 'scoped memory for tpu_custom_call.1']
    #allocation14 [shape = 'u8[512]{0}', space=vmem, size = 0x400, scoped, tag = 'output window, operand 0, single buffered']
    %11 = vsyncpa [#allocation7], 0
    %12 = vsyncpa [#allocation10], 0
    %13 = vsyncpa [#allocation13], 0
    %14 = vsyncpa [#allocation8], 0
    // Predicated region
    $region2: #{tpu_custom_call.1} parent=1 // pred_check
      _
    $region3: #{tpu_custom_call.1} parent=1 // pred_check_branch
      %16 = sbr.rel (0) target = $region5
    $region4: #{tpu_custom_call.1} parent=1 // pred_region
      %s18 = ssub.s32 128, 128
      %19 = vsyncadd [#allocation7], %s18
      %s21 = sshll.u32 [#allocation6], 4
      %s22 = int_to_ptr.vmem [resolvable:$true] %s21
      %24 = dma.hbm_to_vmem [thread:$0]  %s1, 128, %s22, [#allocation7]
    $region5: #{tpu_custom_call.1} parent=1 // pred_fallthru
      _
    // Predicated region
    $region6: #{tpu_custom_call.1} parent=1 // pred_check
      _
    $region7: #{tpu_custom_call.1} parent=1 // pred_check_branch
      %26 = sbr.rel (0) target = $region9
    $region8: #{tpu_custom_call.1} parent=1 // pred_region
      %s28 = ssub.s32 16, 16
      %29 = vsyncadd [#allocation10], %s28
      %s31 = sshll.u32 [#allocation9], 4
      %s32 = int_to_ptr.vmem [resolvable:$true] %s31
      %34 = dma.hbm_to_vmem [thread:$0]  %s2, 16, %s32, [#allocation10]
    $region9: #{tpu_custom_call.1} parent=1 // pred_fallthru
      _
    // Predicated region
    $region10: #{tpu_custom_call.1} parent=1 // pred_check
      _
    $region11: #{tpu_custom_call.1} parent=1 // pred_check_branch
      %36 = sbr.rel (0) target = $region13
    $region12: #{tpu_custom_call.1} parent=1 // pred_region
      %s38 = ssub.s32 128, 128
      %39 = vsyncadd [#allocation10], %s38
      %s41 = sshll.u32 [#allocation11], 4
      %s42 = int_to_ptr.vmem [resolvable:$true] %s41
      %44 = dma.hbm_to_vmem [thread:$0]  %s3, 128, %s42, [#allocation10]
    $region13: #{tpu_custom_call.1} parent=1 // pred_fallthru
      _
    // Predicated region
    $region14: #{tpu_custom_call.1} parent=1 // pred_check
      _
    $region15: #{tpu_custom_call.1} parent=1 // pred_check_branch
      %46 = sbr.rel (0) target = $region17
    $region16: #{tpu_custom_call.1} parent=1 // pred_region
      %s48 = ssub.s32 128, 128
      %49 = vsyncadd [#allocation13], %s48
      %s51 = sshll.u32 [#allocation12], 4
      %s52 = int_to_ptr.vmem [resolvable:$true] %s51
      %54 = dma.hbm_to_vmem [thread:$0]  %s4, 128, %s52, [#allocation13]
    $region17: #{tpu_custom_call.1} parent=1 // pred_fallthru
      _
    // Predicated region
    $region18: #{tpu_custom_call.1} parent=1 // pred_check
      _
    $region19: #{tpu_custom_call.1} parent=1 // pred_check_branch
      %56 = sbr.rel (0) target = $region21
    $region20: #{tpu_custom_call.1} parent=1 // pred_region
      %57 = dma.done [#allocation7], 128
    $region21: #{tpu_custom_call.1} parent=1 // pred_fallthru
      _
    // Predicated region
    $region22: #{tpu_custom_call.1} parent=1 // pred_check
      _
    $region23: #{tpu_custom_call.1} parent=1 // pred_check_branch
      %59 = sbr.rel (0) target = $region25
    $region24: #{tpu_custom_call.1} parent=1 // pred_region
      %60 = dma.done [#allocation10], 16
    $region25: #{tpu_custom_call.1} parent=1 // pred_fallthru
      _
    // Predicated region
    $region26: #{tpu_custom_call.1} parent=1 // pred_check
      _
    $region27: #{tpu_custom_call.1} parent=1 // pred_check_branch
      %62 = sbr.rel (0) target = $region29
    $region28: #{tpu_custom_call.1} parent=1 // pred_region
      %63 = dma.done [#allocation10], 128
    $region29: #{tpu_custom_call.1} parent=1 // pred_fallthru
      _
    // Predicated region
    $region30: #{tpu_custom_call.1} parent=1 // pred_check
      _
    $region31: #{tpu_custom_call.1} parent=1 // pred_check_branch
      %65 = sbr.rel (0) target = $region33
    $region32: #{tpu_custom_call.1} parent=1 // pred_region
      %66 = dma.done [#allocation13], 128
    $region33: #{tpu_custom_call.1} parent=1 // pred_fallthru
      _
    %p67 = scmp.eq.s32.totalorder 0, 0
    // Predicated region
    $region34: #{tpu_custom_call.1} parent=1 // pred_check
      %p68 = pneg %p67
    $region35: #{tpu_custom_call.1} parent=1 // pred_check_branch
      %70 = sbr.rel (%p68) target = $region37
    $region36: #{tpu_custom_call.1} parent=1 // pred_region
      %71 = vst [vmem:[#allocation2] sm:$0x1] 0.0
      %72 = vst [vmem:[#allocation3] sm:$0x1] 0.0
    $region37: #{tpu_custom_call.1} parent=1 // pred_fallthru
      _
    %v73 = vld [vmem:[#allocation6] sm:$0x1f]
    %v74 = vld [vmem:[#allocation9] sm:$0x1]
    %v75 = vlaneseq
    %v76 = vshrl.u32 %v75, 7
    %v77 = vlaneseq
    %v78 = vshrl.u32 %v77, 7
    %v79 = vsub.s32 0, %v78
    %v80 = vrot.slane %v74, %v79
    %vm81 = vcmp.eq.s32.totalorder %v76, %v80
    %vm82 = vcmask 1044480
    %v83 = vsel %vm82, %v73, -inf
    %v84 = vrot.slane %v83, 4
    %v85 = vmax.f32 %v83, %v84
    %v86 = vrot.slane %v85, 2
    %v87 = vmax.f32 %v85, %v86
    %v88 = vrot.slane %v87, 1
    %v89 = vmax.f32 %v87, %v88
    %v90 = vsub.f32 %v73, %v89
    %v91 = vmul.f32 %v90, 1.442695
    %v92 = vpow.pop %v91
    %v93 = vsel %vm82, %v92, 0.0
    %v94 = vrot.slane %v93, 4
    %v95 = vadd.f32 %v93, %v94
    %v96 = vrot.slane %v95, 2
    %v97 = vadd.f32 %v95, %v96
    %v98 = vrot.slane %v97, 1
    %v99 = vadd.f32 %v97, %v98
    %v100 = vlog2.pop %v99
    %v101 = vmul.f32 %v100, 0.6931472
    %v102 = vadd.f32 %v101, %v89
    %v103 = vsel %vm81, %v73, 0.0
    %v104 = vsel %vm82, %v103, 0.0
    %v105 = vrot.slane %v104, 4
    %v106 = vadd.f32 %v104, %v105
    %v107 = vrot.slane %v106, 2
    %v108 = vadd.f32 %v106, %v107
    %v109 = vrot.slane %v108, 1
    %v110 = vadd.f32 %v108, %v109
    %v111 = vsub.f32 %v102, %v110
    %v112 = vld [vmem:[#allocation11] sm:$0x1f]
    %114 = vset.pattern.permute.xlu0 0
    %115 = vperm.xlu0 %114, %v112
    %v116 = vpop.permute.xlu0 %115
    %v118 = vsel %vm81, %v116, 0.0
    %v119 = vsel %vm82, %v118, 0.0
    %v120 = vrot.slane %v119, 4
    %v121 = vadd.f32 %v119, %v120
    %v122 = vrot.slane %v121, 2
    %v123 = vadd.f32 %v121, %v122
    %v124 = vrot.slane %v123, 1
    %v125 = vadd.f32 %v123, %v124
    %v126 = vld [vmem:[#allocation2] sm:$0x1]
    %v127 = vmul.f32 %v125, %v111
    %v128 = vadd.f32 %v126, %v127
    %129 = vst [vmem:[#allocation2] sm:$0x1] %v128
    %v130 = vld [vmem:[#allocation3] sm:$0x1]
    %v131 = vadd.f32 %v130, %v125
    %132 = vst [vmem:[#allocation3] sm:$0x1] %v131
    // Predicated region
    $region38: #{tpu_custom_call.1} parent=1 // pred_check
      %p133 = pneg %p67
    $region39: #{tpu_custom_call.1} parent=1 // pred_check_branch
      %135 = sbr.rel (%p133) target = $region41
    $region40: #{tpu_custom_call.1} parent=1 // pred_region
      %s136 = sld [smem:[#allocation5]]
      %s137 = scvt.s32.f32 %s136
      %v138 = vstv %s137
      %v139 = vrcp.pop %v138
      %s140 = vtos %v139
      %v141 = vld [vmem:[#allocation12] sm:$0xff]
      %v143 = vrot.slane %v141, 2
      %v145 = vsub.f32 %v141, %v143
      %v146 = vand.u32 2147483647, %v145
      %v148 = vrot.slane %v146, 1
      %v150 = vadd.f32 %v146, %v148
      %v152 = vrot.slane %v150, 4
      %v154 = vmul.f32 %v141, %v152
      %v156 = vrot.slane %v154, 4
      %vm158 = vcmask 1040384
      %v159 = vsel %vm158, %v156, 0.0
      %160 = vadd.xlane.f32.xlu0 %v159
      %v161 = vpop.xlane.xlu0 %160
      %v162 = vrot.slane %v161, 4
      %v163 = vadd.f32 %v161, %v162
      %v164 = vrot.slane %v163, 2
      %v165 = vadd.f32 %v163, %v164
      %v166 = vrot.slane %v165, 1
      %v167 = vadd.f32 %v165, %v166
      %s168 = vtos %v167
      %v169 = vmin.f32 %v141, %v143
      %v170 = vmax.f32 %v141, %v143
      %v172 = vrot.slane %v170, 7
      %v174 = vsub.f32 %v169, %v172
      %v175 = vmax.f32 %v174, 0.0
      %v176 = vrot.slane %v141, 7
      %v178 = vsub.f32 %v141, %v176
      %v180 = vrot.slane %v178, 2
      %v182 = vadd.f32 %v178, %v180
      %v183 = vsub.f32 %v182, %v175
      %vm184 = vcmp.ne.f32.partialorder %v183, 0.0
      %v185 = vsel %vm184, %v183, 1.0
      %v186 = vrcp.pop %v185
      %v187 = vmul.f32 %v175, %v186
      %v188 = vsub.f32 1.0, %v187
      %v190 = vrot.slane %v188, 5
      %v192 = vmul.f32 %v141, %v190
      %v194 = vrot.slane %v192, 4
      %v196 = vsel %vm158, %v194, 0.0
      %197 = vadd.xlane.f32.xlu0 %v196
      %v198 = vpop.xlane.xlu0 %197
      %v199 = vrot.slane %v198, 4
      %v200 = vadd.f32 %v198, %v199
      %v201 = vrot.slane %v200, 2
      %v202 = vadd.f32 %v200, %v201
      %v203 = vrot.slane %v202, 1
      %v204 = vadd.f32 %v202, %v203
      %s205 = vtos %v204
      %v206 = vld [vmem:[#allocation2] sm:$0x1]
      %v207 = vsel %vm158, %v206, 0.0
      %208 = vadd.xlane.f32.xlu0 %v207
      %v209 = vpop.xlane.xlu0 %208
      %v210 = vrot.slane %v209, 4
      %v211 = vadd.f32 %v209, %v210
      %v212 = vrot.slane %v211, 2
      %v213 = vadd.f32 %v211, %v212
      %v214 = vrot.slane %v213, 1
      %v215 = vadd.f32 %v213, %v214
      %s216 = vtos %v215
      %v217 = vld [vmem:[#allocation3] sm:$0x1]
      %v218 = vsel %vm158, %v217, 0.0
      %219 = vadd.xlane.f32.xlu0 %v218
      %v220 = vpop.xlane.xlu0 %219
      %v221 = vrot.slane %v220, 4
      %v222 = vadd.f32 %v220, %v221
      %v223 = vrot.slane %v222, 2
      %v224 = vadd.f32 %v222, %v223
      %v225 = vrot.slane %v224, 1
      %v226 = vadd.f32 %v224, %v225
      %s227 = vtos %v226
      %v228 = vstv %s227
      %v229 = vrcp.pop %v228
      %s230 = vtos %v229
      %s231 = smul.f32 %s216, %s230
      %s232 = smul.f32 %s168, %s140
      %s233 = smul.f32 %s205, %s140
      %v234 = vlaneseq
      %v235 = vand.u32 %v234, 127
      %vm236 = vcmp.eq.s32.totalorder %v235, 0
      %v237 = vstv %s231
      %v238 = vsel %vm236, %v237, 0.0
      %vm239 = vcmp.eq.s32.totalorder %v235, 1
      %v240 = vstv %s232
      %v241 = vsel %vm239, %v240, 0.0
      %v242 = vadd.f32 %v238, %v241
      %vm243 = vcmp.eq.s32.totalorder %v235, 2
      %v244 = vstv %s233
      %v245 = vsel %vm243, %v244, 0.0
      %v246 = vadd.f32 %v242, %v245
      %247 = vst [vmem:[#allocation14] sm:$0x1] %v246
    $region41: #{tpu_custom_call.1} parent=1 // pred_fallthru
      _
    // Predicated region
    $region42: #{tpu_custom_call.1} parent=1 // pred_check
      _
    $region43: #{tpu_custom_call.1} parent=1 // pred_check_branch
      %249 = sbr.rel (0) target = $region45
    $region44: #{tpu_custom_call.1} parent=1 // pred_region
      %s251 = ssub.s32 16, 16
      %252 = vsyncadd [#allocation8], %s251
      %s254 = sshll.u32 [#allocation14], 4
      %s255 = int_to_ptr.vmem [resolvable:$true] %s254
      %257 = dma.vmem_to_hbm [thread:$0]  %s255, 16, %s5, [#allocation8]
    $region45: #{tpu_custom_call.1} parent=1 // pred_fallthru
      _
    // Predicated region
    $region46: #{tpu_custom_call.1} parent=1 // pred_check
      _
    $region47: #{tpu_custom_call.1} parent=1 // pred_check_branch
      %259 = sbr.rel (0) target = $region49
    $region48: #{tpu_custom_call.1} parent=1 // pred_region
      %260 = dma.done [#allocation8], 16
    $region49: #{tpu_custom_call.1} parent=1 // pred_fallthru
      _
    %261 = vsyncpa [#allocation7], 1
    %262 = vsyncpa [#allocation10], 1
    %263 = vsyncpa [#allocation13], 1
    %264 = vsyncpa [#allocation8], 1

</llo_original>
